<compile_context>
chip_gen: v7x
topology: tpu7x:2x2x1
jax: 0.10.0
libtpu: 0.0.40
codegen_flags: <defaults>
</compile_context>

<pallas_src>
import functools

import jax
import jax.numpy as jnp
from jax.experimental import pallas as pl
from jax.experimental.pallas import tpu as pltpu


def _round_up(v: int, m: int) -> int:
    return -(-v // m) * m


# ----------------------------------------------------------------------------
# Stage 1: fused QKV projection (tiled matmul, weight resident in VMEM)
# ----------------------------------------------------------------------------
def qkv_proj_kernel(x_ref, w_ref, o_ref):
    # x_ref: (tile_m, C) bf16, w_ref: (C, Wp) bf16, o_ref: (tile_m, Wp) bf16
    o_ref[...] = jnp.dot(
        x_ref[...], w_ref[...], preferred_element_type=jnp.float32
    ).astype(o_ref.dtype)


# ----------------------------------------------------------------------------
# Stage 2: flash attention (online softmax), grid = (B, T//tq, T//tk)
# ----------------------------------------------------------------------------
def flash_kernel(q_ref, k_ref, v_ref, o_ref, m_sc, l_sc, acc_sc, *, tq, tk, scale):
    # q_ref: (1, tq, H) bf16   k_ref/v_ref: (1, tk, H) bf16   o_ref: (1, tq, H) f32
    # m_sc/l_sc: (tq, 1) f32 scratch   acc_sc: (tq, H) f32 scratch
    qi = pl.program_id(1)
    ki = pl.program_id(2)

    @pl.when(ki == 0)
    def _init():
        m_sc[...] = jnp.full(m_sc.shape, -jnp.inf, dtype=m_sc.dtype)
        l_sc[...] = jnp.zeros(l_sc.shape, dtype=l_sc.dtype)
        acc_sc[...] = jnp.zeros(acc_sc.shape, dtype=acc_sc.dtype)

    q_last = (qi + 1) * tq - 1   # last query row covered by this q tile
    k_first = ki * tk            # first key column of this kv tile

    # Skip KV tiles that are entirely above the causal diagonal (fully masked).
    @pl.when(k_first <= q_last)
    def _compute():
        q = q_ref[0]                                        # (tq, H) bf16
        k = k_ref[0]                                        # (tk, H) bf16
        # Contract on the shared head dim directly (no materialized transpose).
        s = jax.lax.dot_general(
            q, k, (((1,), (1,)), ((), ())),
            preferred_element_type=jnp.float32) * scale     # (tq, tk) f32

        # Causal mask from a single 2-D iota comparison (no (B,T,T) int32 tensors).
        row = qi * tq + jax.lax.broadcasted_iota(jnp.int32, (tq, tk), 0)
        col = k_first + jax.lax.broadcasted_iota(jnp.int32, (tq, tk), 1)
        s = jnp.where(col <= row, s, jnp.float32(-1e30))

        m_prev = m_sc[...]
        m_new = jnp.maximum(m_prev, s.max(axis=-1, keepdims=True))
        alpha = jnp.exp(m_prev - m_new)                     # rescale of old partials
        p = jnp.exp(s - m_new)                              # (tq, tk) f32
        l_sc[...] = alpha * l_sc[...] + p.sum(axis=-1, keepdims=True)
        acc_sc[...] = alpha * acc_sc[...] + jnp.dot(
            p.astype(v_ref.dtype), v_ref[0],
            preferred_element_type=jnp.float32)             # (tq, H) f32
        m_sc[...] = m_new

    @pl.when(ki == pl.num_programs(2) - 1)
    def _finalize():
        # Exact normalization (denominator is only (tq, 1); no approx reciprocal).
        o_ref[0] = (acc_sc[...] / l_sc[...]).astype(o_ref.dtype)


# ----------------------------------------------------------------------------
# Wrapper
# ----------------------------------------------------------------------------
@jax.jit
def head_forward(x, wq, wk, wv):
    """x: [B, T, C] f32; wq/wk/wv: [C, H]. Returns [B, T, H] (eval-mode Head)."""
    B, T, C = x.shape
    H = wq.shape[1]
    cdt = jnp.bfloat16                      # MXU compute dtype (f32 accumulation)

    # ---- Stage 1: fused, lane-packed QKV projection -------------------------
    Wp = _round_up(3 * H, 128)              # 3*32 = 96 -> 128 (single pad, not per-head)
    w_qkv = jnp.concatenate([wq, wk, wv], axis=1)
    w_qkv = jnp.pad(w_qkv, ((0, 0), (0, Wp - 3 * H))).astype(cdt)

    BT = B * T
    tile_m = min(256, _round_up(BT, 16))    # bf16 sublane tile = 16 rows
    BT_pad = _round_up(BT, tile_m)
    x2d = x.reshape(BT, C).astype(cdt)
    if BT_pad != BT:
        x2d = jnp.pad(x2d, ((0, BT_pad - BT), (0, 0)))

    qkv = pl.pallas_call(
        qkv_proj_kernel,
        out_shape=jax.ShapeDtypeStruct((BT_pad, Wp), cdt),
        grid_spec=pltpu.PrefetchScalarGridSpec(
            num_scalar_prefetch=0,
            grid=(BT_pad // tile_m,),
            in_specs=[
                pl.BlockSpec((tile_m, C), lambda i: (i, 0)),   # streamed rows
                pl.BlockSpec((C, Wp), lambda i: (0, 0)),       # weight stays resident
            ],
            out_specs=pl.BlockSpec((tile_m, Wp), lambda i: (i, 0)),
        ),
        compiler_params=pltpu.CompilerParams(dimension_semantics=("parallel",)),
    )(x2d, w_qkv)

    q = qkv[:BT, 0 * H:1 * H].reshape(B, T, H)
    k = qkv[:BT, 1 * H:2 * H].reshape(B, T, H)
    v = qkv[:BT, 2 * H:3 * H].reshape(B, T, H)

    # ---- Stage 2: flash attention -------------------------------------------
    tq = min(128, T)
    tk = min(128, T)
    assert T % tq == 0 and T % tk == 0, "T must be divisible by the q/kv tile size"
    scale = float(C) ** -0.5                # module uses C (= n_embd), not head_size

    out = pl.pallas_call(
        functools.partial(flash_kernel, tq=tq, tk=tk, scale=scale),
        out_shape=jax.ShapeDtypeStruct((B, T, H), x.dtype),
        grid_spec=pltpu.PrefetchScalarGridSpec(
            num_scalar_prefetch=0,
            grid=(B, T // tq, T // tk),
            in_specs=[
                pl.BlockSpec((1, tq, H), lambda b, qi, ki: (b, qi, 0)),
                pl.BlockSpec((1, tk, H), lambda b, qi, ki: (b, ki, 0)),
                pl.BlockSpec((1, tk, H), lambda b, qi, ki: (b, ki, 0)),
            ],
            out_specs=pl.BlockSpec((1, tq, H), lambda b, qi, ki: (b, qi, 0)),
            scratch_shapes=[
                pltpu.VMEM((tq, 1), jnp.float32),   # running max m
                pltpu.VMEM((tq, 1), jnp.float32),   # running denom l
                pltpu.VMEM((tq, H), jnp.float32),   # output accumulator
            ],
        ),
        compiler_params=pltpu.CompilerParams(
            dimension_semantics=("parallel", "parallel", "arbitrary")),
    )(q, k, v)
    return out


# ----------------------------------------------------------------------------
# References
# ----------------------------------------------------------------------------
def head_reference(x, wq, wk, wv):
    """Pure-f32 reference matching the PyTorch forward (eval mode)."""
    B, T, C = x.shape
    q = x @ wq
    k = x @ wk
    v = x @ wv
    wei = jnp.einsum('btd,bsd->bts', q, k) * C ** (-0.5)
    mask = jnp.tril(jnp.ones((T, T), dtype=bool))
    wei = jnp.where(mask[None], wei, -jnp.inf)
    wei = jax.nn.softmax(wei, axis=-1)
    return jnp.einsum('bts,bsd->btd', wei, v)


def head_reference_matched(x, wq, wk, wv):
    """Same math with the kernel's bf16 casts (f32 accumulation) — isolates the
    algorithmic error of the Pallas implementation from the deliberate bf16 MXU choice."""
    B, T, C = x.shape
    bf = jnp.bfloat16
    xb = x.astype(bf)
    q = jnp.einsum('btc,ch->bth', xb, wq.astype(bf),
                   preferred_element_type=jnp.float32).astype(bf)
    k = jnp.einsum('btc,ch->bth', xb, wk.astype(bf),
                   preferred_element_type=jnp.float32).astype(bf)
    v = jnp.einsum('btc,ch->bth', xb, wv.astype(bf),
                   preferred_element_type=jnp.float32).astype(bf)
    s = jnp.einsum('btd,bsd->bts', q, k,
                   preferred_element_type=jnp.float32) * C ** (-0.5)
    mask = jnp.tril(jnp.ones((T, T), dtype=bool))
    s = jnp.where(mask[None], s, jnp.float32(-1e30))
    m = jnp.max(s, axis=-1, keepdims=True)
    e = jnp.exp(s - m)
    l = jnp.sum(e, axis=-1, keepdims=True)
    num = jnp.einsum('bts,bsd->btd', e.astype(bf), v,
                     preferred_element_type=jnp.float32)
    return num / l


if __name__ == "__main__":
    # Small shapes consistent with the module: n_embd=384, T <= block_size, head_size=32.
    B, T, C, H = 2, 8, 384, 32

    key = jax.random.PRNGKey(0)
    kx, kq, kk, kv = jax.random.split(key, 4)
    x = jax.random.normal(kx, (B, T, C), dtype=jnp.float32)
    # nn.Linear(n_embd, head_size, bias=False) weight is (H, C); we store its transpose.
    wq = jax.random.normal(kq, (C, H), dtype=jnp.float32) * (C ** -0.5)
    wk = jax.random.normal(kk, (C, H), dtype=jnp.float32) * (C ** -0.5)
    wv = jax.random.normal(kv, (C, H), dtype=jnp.float32) * (C ** -0.5)

    out = jax.block_until_ready(head_forward(x, wq, wk, wv))
    assert out.shape == (B, T, H)

    # Tight check vs a precision-matched reference (proves the flash/online-softmax
    # algorithm and masking are exact; normalization uses an exact divide).
    ref_matched = head_reference_matched(x, wq, wk, wv)
    assert jnp.allclose(out, ref_matched, atol=1e-2, rtol=1e-2), "mismatch vs matched ref"

    # Looser check vs the pure-f32 PyTorch-semantics reference; the gap is entirely the
    # deliberate bf16 MXU-input choice (f32 accumulation kept throughout).
    ref = head_reference(x, wq, wk, wv)
    assert jnp.allclose(out, ref, atol=5e-2, rtol=5e-2), "mismatch vs f32 reference"

    print("KERNEL_OK")
</pallas_src>

<mosaic_0001>
module attributes {stable_mosaic.version = 11 : i64} {
  func.func @qkv_proj_kernel(%arg0: i32, %arg1: memref<16x384xbf16, #tpu.memory_space<vmem>>, %arg2: memref<384x128xbf16, #tpu.memory_space<vmem>>, %arg3: memref<16x128xbf16, #tpu.memory_space<vmem>>) attributes {dimension_semantics = [#tpu.dimension_semantics<parallel>], iteration_bounds = array<i64: 1>, scalar_prefetch = 0 : i64, scratch_operands = 0 : i64, tpu.core_type = #tpu.core_type<tc>, window_params = [{transform_indices = @transform_0, window_bounds = array<i64: 16, 384>}, {pipeline_mode = #tpu.pipeline_mode<synchronous>, transform_indices = @transform_1, window_bounds = array<i64: 384, 128>}, {transform_indices = @transform_2, window_bounds = array<i64: 16, 128>}]} {
    %c0 = arith.constant 0 : index
    %c0_0 = arith.constant 0 : index
    %0 = vector.load %arg1[%c0, %c0_0] : memref<16x384xbf16, #tpu.memory_space<vmem>>, vector<16x384xbf16>
    %c0_1 = arith.constant 0 : index
    %c0_2 = arith.constant 0 : index
    %1 = vector.load %arg2[%c0_1, %c0_2] : memref<384x128xbf16, #tpu.memory_space<vmem>>, vector<384x128xbf16>
    %cst = arith.constant dense<0.000000e+00> : vector<16x128xf32>
    %2 = tpu.matmul %0, %1, %cst {dimension_numbers = #tpu.dot_dimension_numbers<[1], [0], [0], [1], [0, 0, 1, 1], [], []>} : vector<16x384xbf16>, vector<384x128xbf16>, vector<16x128xf32> -> vector<16x128xf32>
    %3 = arith.truncf %2 : vector<16x128xf32> to vector<16x128xbf16>
    %c0_3 = arith.constant 0 : index
    %c0_4 = arith.constant 0 : index
    %4 = vector.load %arg3[%c0_3, %c0_4] : memref<16x128xbf16, #tpu.memory_space<vmem>>, vector<16x128xbf16>
    tpu.vector_store %arg3[%c0_3, %c0_4], %3 {strides = array<i32>} : memref<16x128xbf16, #tpu.memory_space<vmem>>, vector<16x128xbf16>,
    return
  }
  func.func @transform_0(%arg0: i32) -> (i32, i32) {
    %c0_i32 = arith.constant 0 : i32
    %c0_i32_0 = arith.constant 0 : i32
    return %arg0, %c0_i32 : i32, i32
  }
  func.func @transform_1(%arg0: i32) -> (i32, i32) {
    %c0_i32 = arith.constant 0 : i32
    %c0_i32_0 = arith.constant 0 : i32
    %c0_i32_1 = arith.constant 0 : i32
    return %c0_i32, %c0_i32_0 : i32, i32
  }
  func.func @transform_2(%arg0: i32) -> (i32, i32) {
    %c0_i32 = arith.constant 0 : i32
    %c0_i32_0 = arith.constant 0 : i32
    return %arg0, %c0_i32 : i32, i32
  }
}

module attributes {stable_mosaic.version = 11 : i64} {
  func.func @flash_kernel(%arg0: i32, %arg1: i32, %arg2: i32, %arg3: memref<1x8x32xbf16, #tpu.memory_space<vmem>>, %arg4: memref<1x8x32xbf16, #tpu.memory_space<vmem>>, %arg5: memref<1x8x32xbf16, #tpu.memory_space<vmem>>, %arg6: memref<1x8x32xf32, #tpu.memory_space<vmem>>, %arg7: memref<8x1xf32, #tpu.memory_space<vmem>>, %arg8: memref<8x1xf32, #tpu.memory_space<vmem>>, %arg9: memref<8x32xf32, #tpu.memory_space<vmem>>) attributes {dimension_semantics = [#tpu.dimension_semantics<parallel>, #tpu.dimension_semantics<parallel>, #tpu.dimension_semantics<arbitrary>], iteration_bounds = array<i64: 2, 1, 1>, scalar_prefetch = 0 : i64, scratch_operands = 3 : i64, tpu.core_type = #tpu.core_type<tc>, window_params = [{transform_indices = @transform_0, window_bounds = array<i64: 1, 8, 32>}, {transform_indices = @transform_1, window_bounds = array<i64: 1, 8, 32>}, {transform_indices = @transform_2, window_bounds = array<i64: 1, 8, 32>}, {transform_indices = @transform_3, window_bounds = array<i64: 1, 8, 32>}]} {
    %c0_i32 = arith.constant 0 : i32
    %0 = arith.cmpi eq, %arg2, %c0_i32 : i32
    %1 = arith.extui %0 : i1 to i32
    %c0_i32_0 = arith.constant 0 : i32
    %2 = arith.cmpi ne, %1, %c0_i32_0 : i32
    scf.if %2 {
      %cst = arith.constant 0xFF800000 : f32
      %13 = vector.broadcast %cst : f32 to vector<8x1xf32>
      %c0 = arith.constant 0 : index
      %c0_6 = arith.constant 0 : index
      %14 = vector.load %arg7[%c0, %c0_6] : memref<8x1xf32, #tpu.memory_space<vmem>>, vector<8x1xf32>
      tpu.vector_store %arg7[%c0, %c0_6], %13 {strides = array<i32>} : memref<8x1xf32, #tpu.memory_space<vmem>>, vector<8x1xf32>,
      %cst_7 = arith.constant 0.000000e+00 : f32
      %15 = vector.broadcast %cst_7 : f32 to vector<8x1xf32>
      %c0_8 = arith.constant 0 : index
      %c0_9 = arith.constant 0 : index
      %16 = vector.load %arg8[%c0_8, %c0_9] : memref<8x1xf32, #tpu.memory_space<vmem>>, vector<8x1xf32>
      tpu.vector_store %arg8[%c0_8, %c0_9], %15 {strides = array<i32>} : memref<8x1xf32, #tpu.memory_space<vmem>>, vector<8x1xf32>,
      %cst_10 = arith.constant 0.000000e+00 : f32
      %17 = vector.broadcast %cst_10 : f32 to vector<8x32xf32>
      %c0_11 = arith.constant 0 : index
      %c0_12 = arith.constant 0 : index
      %18 = vector.load %arg9[%c0_11, %c0_12] : memref<8x32xf32, #tpu.memory_space<vmem>>, vector<8x32xf32>
      tpu.vector_store %arg9[%c0_11, %c0_12], %17 {strides = array<i32>} : memref<8x32xf32, #tpu.memory_space<vmem>>, vector<8x32xf32>,
    } else {
    }
    %c1_i32 = arith.constant 1 : i32
    %3 = arith.addi %arg1, %c1_i32 : i32
    %c8_i32 = arith.constant 8 : i32
    %4 = arith.muli %3, %c8_i32 : i32
    %c1_i32_1 = arith.constant 1 : i32
    %5 = arith.subi %4, %c1_i32_1 : i32
    %c8_i32_2 = arith.constant 8 : i32
    %6 = arith.muli %arg2, %c8_i32_2 : i32
    %7 = arith.cmpi sle, %6, %5 : i32
    %8 = arith.extui %7 : i1 to i32
    %c0_i32_3 = arith.constant 0 : i32
    %9 = arith.cmpi ne, %8, %c0_i32_3 : i32
    scf.if %9 {
      %c0 = arith.constant 0 : index
      %c0_6 = arith.constant 0 : index
      %c0_7 = arith.constant 0 : index
      %13 = vector.load %arg3[%c0, %c0_6, %c0_7] : memref<1x8x32xbf16, #tpu.memory_space<vmem>>, vector<1x8x32xbf16>
      %14 = vector.shape_cast %13 : vector<1x8x32xbf16> to vector<8x32xbf16>
      %c0_8 = arith.constant 0 : index
      %c0_9 = arith.constant 0 : index
      %c0_10 = arith.constant 0 : index
      %15 = vector.load %arg4[%c0_8, %c0_9, %c0_10] : memref<1x8x32xbf16, #tpu.memory_space<vmem>>, vector<1x8x32xbf16>
      %16 = vector.shape_cast %15 : vector<1x8x32xbf16> to vector<8x32xbf16>
      %cst = arith.constant dense<0.000000e+00> : vector<8x8xf32>
      %17 = tpu.matmul %14, %16, %cst {dimension_numbers = #tpu.dot_dimension_numbers<[1], [1], [0], [0], [0, 0, 1, 0], [], []>} : vector<8x32xbf16>, vector<8x32xbf16>, vector<8x8xf32> -> vector<8x8xf32>
      %cst_11 = arith.constant 0.0510310382 : f32
      %18 = vector.broadcast %cst_11 : f32 to vector<8x8xf32>
      %19 = arith.mulf %17, %18 : vector<8x8xf32>
      %c8_i32_12 = arith.constant 8 : i32
      %20 = arith.muli %arg1, %c8_i32_12 : i32
      %21 = tpu.iota {dimensions = array<i32: 0>} : vector<8x8xi32>
      %22 = vector.broadcast %20 : i32 to vector<8x8xi32>
      %23 = arith.addi %22, %21 : vector<8x8xi32>
      %24 = tpu.iota {dimensions = array<i32: 1>} : vector<8x8xi32>
      %25 = vector.broadcast %6 : i32 to vector<8x8xi32>
      %26 = arith.addi %25, %24 : vector<8x8xi32>
      %27 = arith.cmpi sle, %26, %23 : vector<8x8xi32>
      %cst_13 = arith.constant -1.000000e+30 : f32
      %28 = vector.broadcast %cst_13 : f32 to vector<8x8xf32>
      %29 = arith.select %27, %19, %28 : vector<8x8xi1>, vector<8x8xf32>
      %c0_14 = arith.constant 0 : index
      %c0_15 = arith.constant 0 : index
      %30 = vector.load %arg7[%c0_14, %c0_15] : memref<8x1xf32, #tpu.memory_space<vmem>>, vector<8x1xf32>
      %cst_16 = arith.constant dense<0xFF800000> : vector<8xf32>
      %31 = vector.multi_reduction <maximumf>, %29, %cst_16 [1] : vector<8x8xf32> to vector<8xf32>
      %32 = vector.shape_cast %31 : vector<8xf32> to vector<8x1xf32>
      %33 = arith.maximumf %30, %32 : vector<8x1xf32>
      %34 = arith.subf %30, %33 : vector<8x1xf32>
      %35 = math.exp %34 : vector<8x1xf32>
      %36 = vector.broadcast %33 : vector<8x1xf32> to vector<8x8xf32>
      %37 = arith.subf %29, %36 : vector<8x8xf32>
      %38 = math.exp %37 : vector<8x8xf32>
      %c0_17 = arith.constant 0 : index
      %c0_18 = arith.constant 0 : index
      %39 = vector.load %arg8[%c0_17, %c0_18] : memref<8x1xf32, #tpu.memory_space<vmem>>, vector<8x1xf32>
      %40 = arith.mulf %35, %39 : vector<8x1xf32>
      %cst_19 = arith.constant dense<0.000000e+00> : vector<8xf32>
      %41 = vector.multi_reduction <add>, %38, %cst_19 [1] : vector<8x8xf32> to vector<8xf32>
      %42 = vector.shape_cast %41 : vector<8xf32> to vector<8x1xf32>
      %43 = arith.addf %40, %42 : vector<8x1xf32>
      %c0_20 = arith.constant 0 : index
      %c0_21 = arith.constant 0 : index
      %44 = vector.load %arg8[%c0_20, %c0_21] : memref<8x1xf32, #tpu.memory_space<vmem>>, vector<8x1xf32>
      tpu.vector_store %arg8[%c0_20, %c0_21], %43 {strides = array<i32>} : memref<8x1xf32, #tpu.memory_space<vmem>>, vector<8x1xf32>,
      %c0_22 = arith.constant 0 : index
      %c0_23 = arith.constant 0 : index
      %45 = vector.load %arg9[%c0_22, %c0_23] : memref<8x32xf32, #tpu.memory_space<vmem>>, vector<8x32xf32>
      %46 = vector.broadcast %35 : vector<8x1xf32> to vector<8x32xf32>
      %47 = arith.mulf %46, %45 : vector<8x32xf32>
      %48 = arith.truncf %38 : vector<8x8xf32> to vector<8x8xbf16>
      %c0_24 = arith.constant 0 : index
      %c0_25 = arith.constant 0 : index
      %c0_26 = arith.constant 0 : index
      %49 = vector.load %arg5[%c0_24, %c0_25, %c0_26] : memref<1x8x32xbf16, #tpu.memory_space<vmem>>, vector<1x8x32xbf16>
      %50 = vector.shape_cast %49 : vector<1x8x32xbf16> to vector<8x32xbf16>
      %cst_27 = arith.constant dense<0.000000e+00> : vector<8x32xf32>
      %51 = tpu.matmul %48, %50, %cst_27 {dimension_numbers = #tpu.dot_dimension_numbers<[1], [0], [0], [1], [0, 0, 1, 1], [], []>} : vector<8x8xbf16>, vector<8x32xbf16>, vector<8x32xf32> -> vector<8x32xf32>
      %52 = arith.addf %47, %51 : vector<8x32xf32>
      %c0_28 = arith.constant 0 : index
      %c0_29 = arith.constant 0 : index
      %53 = vector.load %arg9[%c0_28, %c0_29] : memref<8x32xf32, #tpu.memory_space<vmem>>, vector<8x32xf32>
      tpu.vector_store %arg9[%c0_28, %c0_29], %52 {strides = array<i32>} : memref<8x32xf32, #tpu.memory_space<vmem>>, vector<8x32xf32>,
      %c0_30 = arith.constant 0 : index
      %c0_31 = arith.constant 0 : index
      %54 = vector.load %arg7[%c0_30, %c0_31] : memref<8x1xf32, #tpu.memory_space<vmem>>, vector<8x1xf32>
      tpu.vector_store %arg7[%c0_30, %c0_31], %33 {strides = array<i32>} : memref<8x1xf32, #tpu.memory_space<vmem>>, vector<8x1xf32>,
    } else {
    }
    %c0_i32_4 = arith.constant 0 : i32
    %10 = arith.cmpi eq, %arg2, %c0_i32_4 : i32
    %11 = arith.extui %10 : i1 to i32
    %c0_i32_5 = arith.constant 0 : i32
    %12 = arith.cmpi ne, %11, %c0_i32_5 : i32
    scf.if %12 {
      %c0 = arith.constant 0 : index
      %c0_6 = arith.constant 0 : index
      %13 = vector.load %arg9[%c0, %c0_6] : memref<8x32xf32, #tpu.memory_space<vmem>>, vector<8x32xf32>
      %c0_7 = arith.constant 0 : index
      %c0_8 = arith.constant 0 : index
      %14 = vector.load %arg8[%c0_7, %c0_8] : memref<8x1xf32, #tpu.memory_space<vmem>>, vector<8x1xf32>
      %15 = vector.broadcast %14 : vector<8x1xf32> to vector<8x32xf32>
      %16 = arith.divf %13, %15 : vector<8x32xf32>
      %c0_9 = arith.constant 0 : index
      %c0_10 = arith.constant 0 : index
      %c0_11 = arith.constant 0 : index
      %17 = vector.load %arg6[%c0_9, %c0_10, %c0_11] : memref<1x8x32xf32, #tpu.memory_space<vmem>>, vector<1x8x32xf32>
      %18 = vector.shape_cast %17 : vector<1x8x32xf32> to vector<8x32xf32>
      %19 = vector.shape_cast %16 : vector<8x32xf32> to vector<1x8x32xf32>
      tpu.vector_store %arg6[%c0_9, %c0_10, %c0_11], %19 {strides = array<i32>} : memref<1x8x32xf32, #tpu.memory_space<vmem>>, vector<1x8x32xf32>,
    } else {
    }
    return
  }
  func.func @transform_0(%arg0: i32, %arg1: i32, %arg2: i32) -> (i32, i32, i32) {
    %c0_i32 = arith.constant 0 : i32
    %c0_i32_0 = arith.constant 0 : i32
    return %arg0, %arg1, %c0_i32 : i32, i32, i32
  }
  func.func @transform_1(%arg0: i32, %arg1: i32, %arg2: i32) -> (i32, i32, i32) {
    %c0_i32 = arith.constant 0 : i32
    %c0_i32_0 = arith.constant 0 : i32
    return %arg0, %arg2, %c0_i32 : i32, i32, i32
  }
  func.func @transform_2(%arg0: i32, %arg1: i32, %arg2: i32) -> (i32, i32, i32) {
    %c0_i32 = arith.constant 0 : i32
    %c0_i32_0 = arith.constant 0 : i32
    return %arg0, %arg2, %c0_i32 : i32, i32, i32
  }
  func.func @transform_3(%arg0: i32, %arg1: i32, %arg2: i32) -> (i32, i32, i32) {
    %c0_i32 = arith.constant 0 : i32
    %c0_i32_0 = arith.constant 0 : i32
    return %arg0, %arg1, %c0_i32 : i32, i32, i32
  }
}

</mosaic_0001>

<llo_original>
// kernel: head_forward.2
$region0: #{head_forward.2}
  #allocation0 [shape = 'u32[]', space=smem, size = 0x4, offset = 0x4, fixed_abs, tag = 'smem constant byte address 0x4 - core index']
  #allocation1 [shape = 'u32[144,128]{1,0:T(1,128)}', space=vmem, size = 0x12000, scoped, tag = 'internal scratch']
  %s0 = inlined_call_operand.vmem [shape: bf16[16,384], index: 0, kind: input, shape index: {}]
  %s1 = inlined_call_operand.vmem [shape: bf16[384,128], index: 1, kind: input, shape index: {}]
  %s2 = inlined_call_operand.vmem [shape: bf16[16,128], index: 2, kind: output, shape index: {}]
  %s3 = sld [smem:[#allocation0]]
  $region18: #{head_forward.2} parent=0
    _
  %s5 = ssub.s32 1, %s3
  %s6 = scalar_select 0, %s5, %s3
  // Predicated region
  $region2: #{head_forward.2} parent=0 // pred_check
    _
  $region3: #{head_forward.2} parent=0 // pred_check_branch
    %8 = sbr.rel (0) target = $region5
  $region4: #{head_forward.2} parent=0 // pred_region
    _
  $region5: #{head_forward.2} parent=0 // pred_fallthru
    _
  // Predicated region
  $region6: #{head_forward.2} parent=0 // pred_check
    _
  $region7: #{head_forward.2} parent=0 // pred_check_branch
    %10 = sbr.rel (0) target = $region9
  $region8: #{head_forward.2} parent=0 // pred_region
    _
  $region9: #{head_forward.2} parent=0 // pred_fallthru
    _
  %v12 = vld [vmem:[%s0] sm:$0xff]
  %v13 = vld [vmem:[%s0 + $0x8] sm:$0xf]
  %v14 = vld [vmem:[%s0 + $0xc] sm:$0xff]
  %v15 = vld [vmem:[%s0 + $0x14] sm:$0xf]
  %v16 = vld [vmem:[%s1] sm:$0xf]
  %v17 = vld [vmem:[%s1 + $0x4] sm:$0xf]
  %v18 = vld [vmem:[%s1 + $0x8] sm:$0xf]
  %v19 = vld [vmem:[%s1 + $0xc] sm:$0xf]
  %v20 = vld [vmem:[%s1 + $0x10] sm:$0xf]
  %v21 = vld [vmem:[%s1 + $0x14] sm:$0xf]
  %v22 = vld [vmem:[%s1 + $0x18] sm:$0xf]
  %v23 = vld [vmem:[%s1 + $0x1c] sm:$0xf]
  %v24 = vld [vmem:[%s1 + $0x20] sm:$0xf]
  %v25 = vld [vmem:[%s1 + $0x24] sm:$0xf]
  %v26 = vld [vmem:[%s1 + $0x28] sm:$0xf]
  %v27 = vld [vmem:[%s1 + $0x2c] sm:$0xf]
  %v28 = vld [vmem:[%s1 + $0x30] sm:$0xf]
  %v29 = vld [vmem:[%s1 + $0x34] sm:$0xf]
  %v30 = vld [vmem:[%s1 + $0x38] sm:$0xf]
  %v31 = vld [vmem:[%s1 + $0x3c] sm:$0xf]
  %v32 = vld [vmem:[%s1 + $0x40] sm:$0xf]
  %v33 = vld [vmem:[%s1 + $0x44] sm:$0xf]
  %v34 = vld [vmem:[%s1 + $0x48] sm:$0xf]
  %v35 = vld [vmem:[%s1 + $0x4c] sm:$0xf]
  %v36 = vld [vmem:[%s1 + $0x50] sm:$0xf]
  %v37 = vld [vmem:[%s1 + $0x54] sm:$0xf]
  %v38 = vld [vmem:[%s1 + $0x58] sm:$0xf]
  %v39 = vld [vmem:[%s1 + $0x5c] sm:$0xf]
  %v40 = vld [vmem:[%s1 + $0x60] sm:$0xf]
  %v41 = vld [vmem:[%s1 + $0x64] sm:$0xf]
  %v42 = vld [vmem:[%s1 + $0x68] sm:$0xf]
  %v43 = vld [vmem:[%s1 + $0x6c] sm:$0xf]
  %v44 = vld [vmem:[%s1 + $0x70] sm:$0xf]
  %v45 = vld [vmem:[%s1 + $0x74] sm:$0xf]
  %v46 = vld [vmem:[%s1 + $0x78] sm:$0xf]
  %v47 = vld [vmem:[%s1 + $0x7c] sm:$0xf]
  %v48 = vld [vmem:[%s1 + $0x80] sm:$0xf]
  %v49 = vld [vmem:[%s1 + $0x84] sm:$0xf]
  %v50 = vld [vmem:[%s1 + $0x88] sm:$0xf]
  %v51 = vld [vmem:[%s1 + $0x8c] sm:$0xf]
  %v52 = vld [vmem:[%s1 + $0x90] sm:$0xf]
  %v53 = vld [vmem:[%s1 + $0x94] sm:$0xf]
  %v54 = vld [vmem:[%s1 + $0x98] sm:$0xf]
  %v55 = vld [vmem:[%s1 + $0x9c] sm:$0xf]
  %v56 = vld [vmem:[%s1 + $0xa0] sm:$0xf]
  %v57 = vld [vmem:[%s1 + $0xa4] sm:$0xf]
  %v58 = vld [vmem:[%s1 + $0xa8] sm:$0xf]
  %v59 = vld [vmem:[%s1 + $0xac] sm:$0xf]
  %v60 = vld [vmem:[%s1 + $0xb0] sm:$0xf]
  %v61 = vld [vmem:[%s1 + $0xb4] sm:$0xf]
  %v62 = vld [vmem:[%s1 + $0xb8] sm:$0xf]
  %v63 = vld [vmem:[%s1 + $0xbc] sm:$0xf]
  %v68 = vunpack.c.l.b16 %v12
  %v69 = vunpack.c.h.b16 %v12
  %v70 = vunpack.c.l.b16 %v13
  %v71 = vunpack.c.l.b16 %v14
  %v72 = vunpack.c.h.b16 %v14
  %v73 = vunpack.c.l.b16 %v15
  %v74 = vpack.c.b16 %v71, %v68
  %v75 = vpack.c.b16 %v72, %v69
  %v76 = vpack.c.b16 %v73, %v70
  %v128 = vunpack.c.l.b16 %v16
  %v129 = vunpack.c.l.b16 %v17
  %v130 = vunpack.c.l.b16 %v18
  %v131 = vunpack.c.l.b16 %v19
  %v132 = vunpack.c.l.b16 %v20
  %v133 = vunpack.c.l.b16 %v21
  %v134 = vunpack.c.l.b16 %v22
  %v135 = vunpack.c.l.b16 %v23
  %v136 = vunpack.c.l.b16 %v24
  %v137 = vunpack.c.l.b16 %v25
  %v138 = vunpack.c.l.b16 %v26
  %v139 = vunpack.c.l.b16 %v27
  %v140 = vunpack.c.l.b16 %v28
  %v141 = vunpack.c.l.b16 %v29
  %v142 = vunpack.c.l.b16 %v30
  %v143 = vunpack.c.l.b16 %v31
  %v144 = vunpack.c.l.b16 %v32
  %v145 = vunpack.c.l.b16 %v33
  %v146 = vunpack.c.l.b16 %v34
  %v147 = vunpack.c.l.b16 %v35
  %v148 = vunpack.c.l.b16 %v36
  %v149 = vunpack.c.l.b16 %v37
  %v150 = vunpack.c.l.b16 %v38
  %v151 = vunpack.c.l.b16 %v39
  %v152 = vunpack.c.l.b16 %v40
  %v153 = vunpack.c.l.b16 %v41
  %v154 = vunpack.c.l.b16 %v42
  %v155 = vunpack.c.l.b16 %v43
  %v156 = vunpack.c.l.b16 %v44
  %v157 = vunpack.c.l.b16 %v45
  %v158 = vunpack.c.l.b16 %v46
  %v159 = vunpack.c.l.b16 %v47
  %v160 = vunpack.c.l.b16 %v48
  %v161 = vunpack.c.l.b16 %v49
  %v162 = vunpack.c.l.b16 %v50
  %v163 = vunpack.c.l.b16 %v51
  %v164 = vunpack.c.l.b16 %v52
  %v165 = vunpack.c.l.b16 %v53
  %v166 = vunpack.c.l.b16 %v54
  %v167 = vunpack.c.l.b16 %v55
  %v168 = vunpack.c.l.b16 %v56
  %v169 = vunpack.c.l.b16 %v57
  %v170 = vunpack.c.l.b16 %v58
  %v171 = vunpack.c.l.b16 %v59
  %v172 = vunpack.c.l.b16 %v60
  %v173 = vunpack.c.l.b16 %v61
  %v174 = vunpack.c.l.b16 %v62
  %v175 = vunpack.c.l.b16 %v63
  %v176 = vpack.c.b16 %v129, %v128
  %v177 = vpack.c.b16 %v131, %v130
  %v178 = vpack.c.b16 %v133, %v132
  %v179 = vpack.c.b16 %v135, %v134
  %v180 = vpack.c.b16 %v137, %v136
  %v181 = vpack.c.b16 %v139, %v138
  %v182 = vpack.c.b16 %v141, %v140
  %v183 = vpack.c.b16 %v143, %v142
  %v184 = vpack.c.b16 %v145, %v144
  %v185 = vpack.c.b16 %v147, %v146
  %v186 = vpack.c.b16 %v149, %v148
  %v187 = vpack.c.b16 %v151, %v150
  %v188 = vpack.c.b16 %v153, %v152
  %v189 = vpack.c.b16 %v155, %v154
  %v190 = vpack.c.b16 %v157, %v156
  %v191 = vpack.c.b16 %v159, %v158
  %v192 = vpack.c.b16 %v161, %v160
  %v193 = vpack.c.b16 %v163, %v162
  %v194 = vpack.c.b16 %v165, %v164
  %v195 = vpack.c.b16 %v167, %v166
  %v196 = vpack.c.b16 %v169, %v168
  %v197 = vpack.c.b16 %v171, %v170
  %v198 = vpack.c.b16 %v173, %v172
  %v199 = vpack.c.b16 %v175, %v174
  %224 = vmatprep.subr.bf16.mxu0 0
  %225 = vmatpush1.bf16.msra.mxu0 %v176
  %226 = vmatprep.subr.bf16.mxu0 0
  %227 = vmatpush1.bf16.msra.mxu0 %v177
  %228 = vmatprep.subr.bf16.mxu0 0
  %229 = vmatpush1.bf16.msra.mxu0 %v178
  %230 = vmatprep.subr.bf16.mxu0 0
  %231 = vmatpush1.bf16.msra.mxu0 %v179
  %232 = vmatprep.subr.bf16.mxu0 0
  %233 = vmatpush1.bf16.msra.mxu0 %v180
  %234 = vmatprep.subr.bf16.mxu0 0
  %235 = vmatpush1.bf16.msra.mxu0 %v181
  %236 = vmatprep.subr.bf16.mxu0 0
  %237 = vmatpush1.bf16.msra.mxu0 %v182
  %238 = vmatprep.subr.bf16.mxu0 0
  %239 = vmatpush1.bf16.msra.mxu0 %v183
  %240 = vmatprep.subr.bf16.mxu0 0
  %241 = vmatpush1.bf16.msra.mxu0 %v184
  %242 = vmatprep.subr.bf16.mxu0 0
  %243 = vmatpush1.bf16.msra.mxu0 %v185
  %244 = vmatprep.subr.bf16.mxu0 0
  %245 = vmatpush1.bf16.msra.mxu0 %v186
  %246 = vmatprep.subr.bf16.mxu0 0
  %247 = vmatpush1.bf16.msra.mxu0 %v187
  %248 = vmatprep.subr.bf16.mxu0 0
  %249 = vmatpush1.bf16.msra.mxu0 %v188
  %250 = vmatprep.subr.bf16.mxu0 0
  %251 = vmatpush1.bf16.msra.mxu0 %v189
  %252 = vmatprep.subr.bf16.mxu0 0
  %253 = vmatpush1.bf16.msra.mxu0 %v190
  %254 = vmatprep.subr.bf16.mxu0 0
  %255 = vmatpush1.bf16.msra.mxu0 %v191
  %256 = vmatprep.mubr.bf16.mxu0 %v75
  %257 = vmatmul.mubr.bf16.gmra.mrb[0].mxu0 %v74
  %v258 = vpop.f32.mrb[0].mxu0
  %v259 = vadd.f32 0.0, %v258
  %v260 = vpop.f32.mrb[0].mxu0
  %v261 = vpop.f32.mrb[0].mxu0
  %v262 = vadd.f32 0.0, %v261
  %v263 = vpop.f32.mrb[0].mxu0
  %264 = vdwg.mxu0
  %265 = vmatprep.subr.bf16.mxu0 0
  %266 = vmatpush1.bf16.msra.mxu0 %v192
  %267 = vmatprep.subr.bf16.mxu0 0
  %268 = vmatpush1.bf16.msra.mxu0 %v193
  %269 = vmatprep.subr.bf16.mxu0 0
  %270 = vmatpush1.bf16.msra.mxu0 %v194
  %271 = vmatprep.subr.bf16.mxu0 0
  %272 = vmatpush1.bf16.msra.mxu0 %v195
  %273 = vmatprep.subr.bf16.mxu0 0
  %274 = vmatpush1.bf16.msra.mxu0 %v196
  %275 = vmatprep.subr.bf16.mxu0 0
  %276 = vmatpush1.bf16.msra.mxu0 %v197
  %277 = vmatprep.subr.bf16.mxu0 0
  %278 = vmatpush1.bf16.msra.mxu0 %v198
  %279 = vmatprep.subr.bf16.mxu0 0
  %280 = vmatpush1.bf16.msra.mxu0 %v199
  %281 = vmatprep.subr.bf16.mxu0 0
  %282 = vmatpush1.bf16.msra.mxu0 0
  %283 = vmatprep.subr.bf16.mxu0 0
  %284 = vmatpush1.bf16.msra.mxu0 0
  %285 = vmatprep.subr.bf16.mxu0 0
  %286 = vmatpush1.bf16.msra.mxu0 0
  %287 = vmatprep.subr.bf16.mxu0 0
  %288 = vmatpush1.bf16.msra.mxu0 0
  %289 = vmatprep.subr.bf16.mxu0 0
  %290 = vmatpush1.bf16.msra.mxu0 0
  %291 = vmatprep.subr.bf16.mxu0 0
  %292 = vmatpush1.bf16.msra.mxu0 0
  %293 = vmatprep.subr.bf16.mxu0 0
  %294 = vmatpush1.bf16.msra.mxu0 0
  %295 = vmatprep.subr.bf16.mxu0 0
  %296 = vmatpush1.bf16.msra.mxu0 0
  %297 = vmatprep.mubr.bf16.mxu0 0
  %298 = vmatmul.mubr.bf16.gmra.mrb[0].mxu0 %v76
  %v299 = vpop.f32.mrb[0].mxu0
  %v300 = vadd.f32 %v259, %v299
  %v301 = vpop.f32.mrb[0].mxu0
  %v302 = vpop.f32.mrb[0].mxu0
  %v303 = vadd.f32 %v262, %v302
  %v304 = vpop.f32.mrb[0].mxu0
  %305 = vdwg.mxu0
  %v306 = vpack.c.bf16 %v303, %v300
  %v308 = vunpack.c.l.b16 %v306
  %v309 = vunpack.c.h.b16 %v306
  %v310 = vpack.c.b16 %v308, %v308
  %v311 = vpack.c.b16 %v309, %v309
  %314 = vst [vmem:[%s2] sm:$0xf] %v310
  %315 = vst [vmem:[%s2 + $0x4] sm:$0xf] %v311
  // Predicated region
  $region10: #{head_forward.2} parent=0 // pred_check
    _
  $region11: #{head_forward.2} parent=0 // pred_check_branch
    %317 = sbr.rel (0) target = $region13
  $region12: #{head_forward.2} parent=0 // pred_region
    _
  $region13: #{head_forward.2} parent=0 // pred_fallthru
    _
  // Predicated region
  $region14: #{head_forward.2} parent=0 // pred_check
    _
  $region15: #{head_forward.2} parent=0 // pred_check_branch
    %319 = sbr.rel (0) target = $region17
  $region16: #{head_forward.2} parent=0 // pred_region
    _
  $region17: #{head_forward.2} parent=0 // pred_fallthru
    _

// kernel: head_forward.3
$region0: #{head_forward.3}
  #allocation0 [shape = 'u32[]', space=smem, size = 0x4, offset = 0x4, fixed_abs, tag = 'smem constant byte address 0x4 - core index']
  #allocation1 [shape = 'u32[144,128]{1,0:T(1,128)}', space=vmem, size = 0x12000, scoped, tag = 'internal scratch']
  #allocation2 [shape = 'f32[8,1]{1,0:T(8,128)}', space=vmem, size = 0x1000, scoped, tag = 'scratch operand']
  #allocation3 [shape = 'f32[8,1]{1,0:T(8,128)}', space=vmem, size = 0x1000, scoped, tag = 'scratch operand']
  #allocation4 [shape = 'f32[8,32]{1,0:T(8,128)}', space=vmem, size = 0x1000, scoped, tag = 'scratch operand']
  %s0 = inlined_call_operand.vmem [shape: bf16[2,8,32], index: 0, kind: input, shape index: {}]
  %s1 = inlined_call_operand.vmem [shape: bf16[2,8,32], index: 1, kind: input, shape index: {}]
  %s2 = inlined_call_operand.vmem [shape: bf16[2,8,32], index: 2, kind: input, shape index: {}]
  %s3 = inlined_call_operand.hbm [shape: f32[2,8,32], index: 3, kind: output, shape index: {}]
  %s4 = sld [smem:[#allocation0]]
  $region57: #{head_forward.3} parent=0
    _
  %s6 = ssub.s32 1, %s4
  %s7 = scalar_select 0, %s6, %s4
  $region1: #{head_forward.3} parent=0
    #allocation5 [shape = 'u8[8192]{0}', space=vmem, size = 0x2000, scoped, tag = 'output window, operand 0']
    #allocation6 [shape = 's32[2]{0}', space=sflag, size = 0x8, scoped, tag = 'scoped memory for head_forward.3']
    %8 = vsyncpa [#allocation6], 0
    %s9 = scalar_lea.sflag [#allocation6], 1
    %10 = vsyncpa %s9, 0
    loop: start=0, step=1, limit=4
    $region2: #{head_forward.3} parent=1 // loop_pre_header
      _
    $region3: #{head_forward.3} parent=1 // loop_header
      %s12 = sphi 0, %s16
      %p13 = scmp.ge.s32.totalorder %s12, 4
      %s19 = sphi 0, %s38
      %s20 = sphi 0, %s34
      %s21 = sphi 0, %s30
      %s22 = sphi 0, %s19
      %s23 = sphi 0, %s20
      %s24 = sphi 0, %s21
      %s25 = sphi 0, %s22
      %s26 = sphi 0, %s23
      %s27 = sphi 0, %s24
      %s43 = sphi 0, %s45
      %s46 = sphi 0, %s43
      %s47 = sphi 0, %s46
      %s63 = sphi 0, %s47
      %s71 = sphi 0, %s73
      %s74 = sphi 0, %s71
      %s75 = sphi 0, %s74
      %s91 = sphi 0, %s75
      %s99 = sphi 0, %s101
      %s102 = sphi 0, %s99
      %s103 = sphi 0, %s102
      %s119 = sphi 0, %s103
      %s127 = sphi 0, %s129
      %s130 = sphi 0, %s127
      %s131 = sphi 0, %s130
      %s147 = sphi 0, %s131
    $region4: #{head_forward.3} parent=1 // loop_header_branch
      %15 = sbr.rel (%p13) target = $region8
    $region5: #{head_forward.3} parent=1 // loop_body
      %s17 = ssub.s32 %s12, 1
      %s18 = ssub.s32 %s12, 2
      %s28 = sadd.s32 1, %s21
      %p29 = scmp.ge.s32.totalorder %s28, 1
      %s30 = scalar_select %p29, 0, %s28
      %s31 = sadd.s32 1, %s20
      %s32 = scalar_select %p29, %s31, %s20
      %p33 = scmp.ge.s32.totalorder %s32, 1
      %s34 = scalar_select %p33, 0, %s32
      %s35 = sadd.s32 1, %s19
      %s36 = scalar_select %p33, %s35, %s19
      %p37 = scmp.ge.s32.totalorder %s36, 2
      %s38 = scalar_select %p37, 0, %s36
      %s39 = ssub.s32 %s19, %s38
      %s40 = ssub.s32 %s20, %s34
      %s41 = sor.u32 %s39, %s40
      %p42 = scmp.eq.s32.totalorder %s41, 0
      %s44 = sadd.s32 %s43, 1
      %s45 = scalar_select %p42, %s43, %s44
      %p48 = pneg %p42
      %p49 = scmp.eq.s32.totalorder %s12, 1
      %p50 = por %p48, %p49
      %p51 = scmp.ne.s32.totalorder %s43, %s46
      %p52 = scmp.eq.s32.totalorder %s12, 0
      %p53 = por %p51, %p52
      %p54 = scmp.ne.s32.totalorder %s43, %s46
      %p55 = scmp.eq.s32.totalorder %s17, 1
      %p56 = por %p54, %p55
      %p57 = scmp.ne.s32.totalorder %s46, %s47
      %p58 = scmp.eq.s32.totalorder %s17, 0
      %p59 = por %p57, %p58
      %p60 = scmp.ne.s32.totalorder %s46, %s47
      %p61 = scmp.eq.s32.totalorder %s18, 1
      %p62 = por %p60, %p61
      %p64 = scmp.ne.s32.totalorder %s47, %s63
      %p65 = scmp.eq.s32.totalorder %s18, 0
      %p66 = por %p64, %p65
      %s67 = ssub.s32 %s19, %s38
      %s68 = ssub.s32 %s21, %s30
      %s69 = sor.u32 %s67, %s68
      %p70 = scmp.eq.s32.totalorder %s69, 0
      %s72 = sadd.s32 %s71, 1
      %s73 = scalar_select %p70, %s71, %s72
      %p76 = pneg %p70
      %p77 = scmp.eq.s32.totalorder %s12, 1
      %p78 = por %p76, %p77
      %p79 = scmp.ne.s32.totalorder %s71, %s74
      %p80 = scmp.eq.s32.totalorder %s12, 0
      %p81 = por %p79, %p80
      %p82 = scmp.ne.s32.totalorder %s71, %s74
      %p83 = scmp.eq.s32.totalorder %s17, 1
      %p84 = por %p82, %p83
      %p85 = scmp.ne.s32.totalorder %s74, %s75
      %p86 = scmp.eq.s32.totalorder %s17, 0
      %p87 = por %p85, %p86
      %p88 = scmp.ne.s32.totalorder %s74, %s75
      %p89 = scmp.eq.s32.totalorder %s18, 1
      %p90 = por %p88, %p89
      %p92 = scmp.ne.s32.totalorder %s75, %s91
      %p93 = scmp.eq.s32.totalorder %s18, 0
      %p94 = por %p92, %p93
      %s95 = ssub.s32 %s19, %s38
      %s96 = ssub.s32 %s21, %s30
      %s97 = sor.u32 %s95, %s96
      %p98 = scmp.eq.s32.totalorder %s97, 0
      %s100 = sadd.s32 %s99, 1
      %s101 = scalar_select %p98, %s99, %s100
      %p104 = pneg %p98
      %p105 = scmp.eq.s32.totalorder %s12, 1
      %p106 = por %p104, %p105
      %p107 = scmp.ne.s32.totalorder %s99, %s102
      %p108 = scmp.eq.s32.totalorder %s12, 0
      %p109 = por %p107, %p108
      %p110 = scmp.ne.s32.totalorder %s99, %s102
      %p111 = scmp.eq.s32.totalorder %s17, 1
      %p112 = por %p110, %p111
      %p113 = scmp.ne.s32.totalorder %s102, %s103
      %p114 = scmp.eq.s32.totalorder %s17, 0
      %p115 = por %p113, %p114
      %p116 = scmp.ne.s32.totalorder %s102, %s103
      %p117 = scmp.eq.s32.totalorder %s18, 1
      %p118 = por %p116, %p117
      %p120 = scmp.ne.s32.totalorder %s103, %s119
      %p121 = scmp.eq.s32.totalorder %s18, 0
      %p122 = por %p120, %p121
      %s123 = ssub.s32 %s19, %s38
      %s124 = ssub.s32 %s20, %s34
      %s125 = sor.u32 %s123, %s124
      %p126 = scmp.eq.s32.totalorder %s125, 0
      %s128 = sadd.s32 %s127, 1
      %s129 = scalar_select %p126, %s127, %s128
      %p132 = pneg %p126
      %p133 = scmp.eq.s32.totalorder %s12, 1
      %p134 = por %p132, %p133
      %p135 = scmp.ne.s32.totalorder %s127, %s130
      %p136 = scmp.eq.s32.totalorder %s12, 0
      %p137 = por %p135, %p136
      %p138 = scmp.ne.s32.totalorder %s127, %s130
      %p139 = scmp.eq.s32.totalorder %s17, 1
      %p140 = por %p138, %p139
      %p141 = scmp.ne.s32.totalorder %s130, %s131
      %p142 = scmp.eq.s32.totalorder %s17, 0
      %p143 = por %p141, %p142
      %p144 = scmp.ne.s32.totalorder %s130, %s131
      %p145 = scmp.eq.s32.totalorder %s18, 1
      %p146 = por %p144, %p145
      %p148 = scmp.ne.s32.totalorder %s131, %s147
      %p149 = scmp.eq.s32.totalorder %s18, 0
      %p150 = por %p148, %p149
      %p151 = scmp.le.s32.totalorder 1, %s12
      %p152 = scmp.lt.s32.totalorder %s12, 3
      %p153 = pnand %p151, %p152
      %p154 = pneg %p153
      // Predicated region
      $region9: #{head_forward.3} parent=5 // pred_check
        _
      $region10: #{head_forward.3} parent=5 // pred_check_branch
        %156 = sbr.rel (%p153) target = $region12
      $region11: #{head_forward.3} parent=5 // pred_region
        %s157 = ssub.s32 %s12, 1
      $region12: #{head_forward.3} parent=5 // pred_fallthru
        _
      %p158 = scmp.lt.s32.totalorder %s12, 2
      // Predicated region
      $region13: #{head_forward.3} parent=5 // pred_check
        %p159 = pneg %p158
      $region14: #{head_forward.3} parent=5 // pred_check_branch
        %161 = sbr.rel (%p159) target = $region16
      $region15: #{head_forward.3} parent=5 // pred_region
        // Predicated region
        $region17: #{head_forward.3} parent=15 // pred_check
          %p162 = pneg %p53
        $region18: #{head_forward.3} parent=15 // pred_check_branch
          %164 = sbr.rel (%p162) target = $region20
        $region19: #{head_forward.3} parent=15 // pred_region
          %p165 = scmp.lt.s32.totalorder %s19, 1
          %s166 = scalar_select %p165, %s19, 1
          %p167 = scmp.lt.s32.totalorder %s20, 0
          %s168 = scalar_select %p167, %s20, 0
          %s169 = sadd.s32 %s168, %s166
          %s170 = smul.addr %s169, 4
          %s171 = scalar_lea.vmem %s0, %s170
        $region20: #{head_forward.3} parent=15 // pred_fallthru
          _
        // Predicated region
        $region21: #{head_forward.3} parent=15 // pred_check
          %p172 = pneg %p81
        $region22: #{head_forward.3} parent=15 // pred_check_branch
          %174 = sbr.rel (%p172) target = $region24
        $region23: #{head_forward.3} parent=15 // pred_region
          %p175 = scmp.lt.s32.totalorder %s19, 1
          %s176 = scalar_select %p175, %s19, 1
          %p177 = scmp.lt.s32.totalorder %s21, 0
          %s178 = scalar_select %p177, %s21, 0
          %s179 = sadd.s32 %s178, %s176
          %s180 = smul.addr %s179, 4
          %s181 = scalar_lea.vmem %s1, %s180
        $region24: #{head_forward.3} parent=15 // pred_fallthru
          _
        // Predicated region
        $region25: #{head_forward.3} parent=15 // pred_check
          %p182 = pneg %p109
        $region26: #{head_forward.3} parent=15 // pred_check_branch
          %184 = sbr.rel (%p182) target = $region28
        $region27: #{head_forward.3} parent=15 // pred_region
          %p185 = scmp.lt.s32.totalorder %s19, 1
          %s186 = scalar_select %p185, %s19, 1
          %p187 = scmp.lt.s32.totalorder %s21, 0
          %s188 = scalar_select %p187, %s21, 0
          %s189 = sadd.s32 %s188, %s186
          %s190 = smul.addr %s189, 4
          %s191 = scalar_lea.vmem %s2, %s190
        $region28: #{head_forward.3} parent=15 // pred_fallthru
          _
      $region16: #{head_forward.3} parent=5 // pred_fallthru
        _
      %p192 = scmp.le.s32.totalorder 1, %s12
      %p193 = scmp.lt.s32.totalorder %s12, 3
      %p194 = pnand %p192, %p193
      %p195 = pneg %p194
      // Predicated region
      $region29: #{head_forward.3} parent=5 // pred_check
        _
      $region30: #{head_forward.3} parent=5 // pred_check_branch
        %197 = sbr.rel (%p194) target = $region32
      $region31: #{head_forward.3} parent=5 // pred_region
        %s198 = ssub.s32 %s12, 1
        %p199 = scmp.lt.s32.totalorder %s22, 1
        %s200 = scalar_select %p199, %s22, 1
        %p201 = scmp.lt.s32.totalorder %s23, 0
        %s202 = scalar_select %p201, %s23, 0
        %s203 = sadd.s32 %s202, %s200
        %s204 = smul.addr %s203, 4
        %s205 = scalar_lea.vmem %s0, %s204
        %p206 = pneg %p59
        %p207 = pneg %p56
        %p208 = scmp.lt.s32.totalorder %s22, 1
        %s209 = scalar_select %p208, %s22, 1
        %p210 = scmp.lt.s32.totalorder %s24, 0
        %s211 = scalar_select %p210, %s24, 0
        %s212 = sadd.s32 %s211, %s209
        %s213 = smul.addr %s212, 4
        %s214 = scalar_lea.vmem %s1, %s213
        %p215 = pneg %p87
        %p216 = pneg %p84
        %p217 = scmp.lt.s32.totalorder %s22, 1
        %s218 = scalar_select %p217, %s22, 1
        %p219 = scmp.lt.s32.totalorder %s24, 0
        %s220 = scalar_select %p219, %s24, 0
        %s221 = sadd.s32 %s220, %s218
        %s222 = smul.addr %s221, 4
        %s223 = scalar_lea.vmem %s2, %s222
        %p224 = pneg %p115
        %p225 = pneg %p112
        %p226 = pneg %p143
        %p227 = pneg %p140
        %s228 = sand.u32 %s130, 1
        %s229 = scalar_lea.sflag [#allocation6], %s228
        %s230 = sand.u32 %s130, 1
        %s231 = smul.addr %s230, 8
        %s232 = scalar_lea.vmem [#allocation5], %s231
        %p233 = scmp.lt.s32.totalorder %s22, 1
        %s234 = scalar_select %p233, %s22, 1
        %p235 = scmp.lt.s32.totalorder %s23, 0
        %s236 = scalar_select %p235, %s23, 0
        %s237 = sadd.s32 %s236, %s234
        %s238 = smul.addr %s237, 4
        %s239 = scalar_lea.vmem %s0, %s238
        %p240 = scmp.lt.s32.totalorder %s22, 1
        %s241 = scalar_select %p240, %s22, 1
        %p242 = scmp.lt.s32.totalorder %s24, 0
        %s243 = scalar_select %p242, %s24, 0
        %s244 = sadd.s32 %s243, %s241
        %s245 = smul.addr %s244, 4
        %s246 = scalar_lea.vmem %s1, %s245
        %p247 = scmp.lt.s32.totalorder %s22, 1
        %s248 = scalar_select %p247, %s22, 1
        %p249 = scmp.lt.s32.totalorder %s24, 0
        %s250 = scalar_select %p249, %s24, 0
        %s251 = sadd.s32 %s250, %s248
        %s252 = smul.addr %s251, 4
        %s253 = scalar_lea.vmem %s2, %s252
        %p255 = scmp.eq.s32.totalorder %s24, 0
        // Predicated region
        $region33: #{head_forward.3} parent=31 // pred_check
          %p256 = pneg %p255
        $region34: #{head_forward.3} parent=31 // pred_check_branch
          %258 = sbr.rel (%p256) target = $region36
        $region35: #{head_forward.3} parent=31 // pred_region
          %vm259 = vcmask 7168
          %260 = vst.msk [vmem:[#allocation2] sm:$0xff] %vm259, -inf
          %261 = vst.msk [vmem:[#allocation3] sm:$0xff] %vm259, 0.0
          %vm262 = vcmask 261120
          %263 = vst.msk [vmem:[#allocation4] sm:$0xff] %vm262, 0.0
        $region36: #{head_forward.3} parent=31 // pred_fallthru
          _
        %s264 = sadd.s32 %s23, 1
        %s265 = smul.u32 %s264, 8
        %s266 = ssub.s32 %s265, 1
        %s267 = smul.u32 %s24, 8
        %p268 = scmp.le.s32.totalorder %s267, %s266
        // Predicated region
        $region37: #{head_forward.3} parent=31 // pred_check
          %p269 = pneg %p268
        $region38: #{head_forward.3} parent=31 // pred_check_branch
          %271 = sbr.rel (%p269) target = $region40
        $region39: #{head_forward.3} parent=31 // pred_region
          %v272 = vld [vmem:[%s239] sm:$0xf]
          %v273 = vld [vmem:[%s246] sm:$0xf]
          %vm274 = vcmask 261120
          %v276 = vsel %vm274, %v272, 0
          %v279 = vsel %vm274, %v273, 0
          %281 = vmatprep.subr.bf16.mxu0 0
          %282 = vmatpush1.bf16.xpose.msra.mxu0 %v279
          %283 = vmatprep.subr.bf16.mxu0 0
          %284 = vmatpush1.bf16.xpose.msra.mxu0 0
          %285 = vmatprep.subr.bf16.mxu0 0
          %286 = vmatpush1.bf16.xpose.msra.mxu0 0
          %287 = vmatprep.subr.bf16.mxu0 0
          %288 = vmatpush1.bf16.xpose.msra.mxu0 0
          %289 = vmatprep.subr.bf16.mxu0 0
          %290 = vmatpush1.bf16.xpose.msra.mxu0 0
          %291 = vmatprep.subr.bf16.mxu0 0
          %292 = vmatpush1.bf16.xpose.msra.mxu0 0
          %293 = vmatprep.subr.bf16.mxu0 0
          %294 = vmatpush1.bf16.xpose.msra.mxu0 0
          %295 = vmatprep.subr.bf16.mxu0 0
          %296 = vmatpush1.bf16.xpose.msra.mxu0 0
          %297 = vmatprep.subr.bf16.mxu0 0
          %298 = vmatpush1.bf16.xpose.msra.mxu0 0
          %299 = vmatprep.subr.bf16.mxu0 0
          %300 = vmatpush1.bf16.xpose.msra.mxu0 0
          %301 = vmatprep.subr.bf16.mxu0 0
          %302 = vmatpush1.bf16.xpose.msra.mxu0 0
          %303 = vmatprep.subr.bf16.mxu0 0
          %304 = vmatpush1.bf16.xpose.msra.mxu0 0
          %305 = vmatprep.subr.bf16.mxu0 0
          %306 = vmatpush1.bf16.xpose.msra.mxu0 0
          %307 = vmatprep.subr.bf16.mxu0 0
          %308 = vmatpush1.bf16.xpose.msra.mxu0 0
          %309 = vmatprep.subr.bf16.mxu0 0
          %310 = vmatpush1.bf16.xpose.msra.mxu0 0
          %311 = vmatprep.subr.bf16.mxu0 0
          %312 = vmatpush1.bf16.xpose.msra.mxu0 0
          %313 = vmatprep.mubr.bf16.mxu0 0
          %314 = vmatmul.mubr.bf16.gmra.mrb[0].mxu0 %v276
          %v315 = vpop.f32.mrb[0].mxu0
          %v316 = vadd.f32 0.0, %v315
          %v317 = vpop.f32.mrb[0].mxu0
          %v318 = vpop.f32.mrb[0].mxu0
          %v319 = vpop.f32.mrb[0].mxu0
          %320 = vdwg.mxu0
          %v321 = vmul.f32 %v316, 0.05103104
          %s322 = smul.u32 %s23, 8
          %v323 = vlaneseq
          %v324 = vshrl.u32 %v323, 7
          %v325 = vstv %s322
          %v326 = vadd.s32 %v325, %v324
          %v327 = vlaneseq
          %v328 = vand.u32 %v327, 127
          %v329 = vstv %s267
          %v330 = vadd.s32 %v329, %v328
          %vm331 = vcmp.le.s32.totalorder %v330, %v326
          %v332 = vsel %vm331, %v321, -1e+30
          %v333 = vld [vmem:[#allocation2] sm:$0xff]
          %vm334 = vcmask 64512
          %v335 = vsel %vm334, %v332, -inf
          %336 = vmax.xlane.f32.xlu0 %v335
          %v337 = vpop.xlane.xlu0 %336
          %v338 = vmax.f32 %v333, %v337
          %v339 = vsub.f32 %v333, %v338
          %v340 = vmul.f32 %v339, 1.442695
          %v341 = vpow.pop %v340
          %343 = vset.pattern.permute.xlu0 0
          %344 = vperm.xlu0 %343, %v338
          %v345 = vpop.permute.xlu0 %344
          %v347 = vsub.f32 %v332, %v345
          %v348 = vmul.f32 %v347, 1.442695
          %v349 = vpow.pop %v348
          %v350 = vld [vmem:[#allocation3] sm:$0xff]
          %v351 = vmul.f32 %v341, %v350
          %v352 = vsel %vm334, %v349, 0.0
          %353 = vadd.xlane.f32.xlu0 %v352
          %v354 = vpop.xlane.xlu0 %353
          %v355 = vadd.f32 %v351, %v354
          %vm356 = vcmask 7168
          %357 = vst.msk [vmem:[#allocation3] sm:$0xff] %vm356, %v355
          %v358 = vld [vmem:[#allocation4] sm:$0xff]
          %360 = vset.pattern.permute.xlu0 0
          %361 = vperm.xlu0 %360, %v341
          %v362 = vpop.permute.xlu0 %361
          %v364 = vmul.f32 %v362, %v358
          %v365 = vpack.c.bf16 %v349, %v349
          %v366 = vld [vmem:[%s253] sm:$0xf]
          %v368 = vsel %vm334, %v365, 0
          %vm370 = vcmask 1043456
          %v372 = vsel %vm370, %v366, 0
          %374 = vmatprep.subr.bf16.mxu0 0
          %375 = vmatpush1.bf16.msra.mxu0 %v372
          %376 = vmatprep.subr.bf16.mxu0 0
          %377 = vmatpush1.bf16.msra.mxu0 0
          %378 = vmatprep.subr.bf16.mxu0 0
          %379 = vmatpush1.bf16.msra.mxu0 0
          %380 = vmatprep.subr.bf16.mxu0 0
          %381 = vmatpush1.bf16.msra.mxu0 0
          %382 = vmatprep.subr.bf16.mxu0 0
          %383 = vmatpush1.bf16.msra.mxu0 0
          %384 = vmatprep.subr.bf16.mxu0 0
          %385 = vmatpush1.bf16.msra.mxu0 0
          %386 = vmatprep.subr.bf16.mxu0 0
          %387 = vmatpush1.bf16.msra.mxu0 0
          %388 = vmatprep.subr.bf16.mxu0 0
          %389 = vmatpush1.bf16.msra.mxu0 0
          %390 = vmatprep.subr.bf16.mxu0 0
          %391 = vmatpush1.bf16.msra.mxu0 0
          %392 = vmatprep.subr.bf16.mxu0 0
          %393 = vmatpush1.bf16.msra.mxu0 0
          %394 = vmatprep.subr.bf16.mxu0 0
          %395 = vmatpush1.bf16.msra.mxu0 0
          %396 = vmatprep.subr.bf16.mxu0 0
          %397 = vmatpush1.bf16.msra.mxu0 0
          %398 = vmatprep.subr.bf16.mxu0 0
          %399 = vmatpush1.bf16.msra.mxu0 0
          %400 = vmatprep.subr.bf16.mxu0 0
          %401 = vmatpush1.bf16.msra.mxu0 0
          %402 = vmatprep.subr.bf16.mxu0 0
          %403 = vmatpush1.bf16.msra.mxu0 0
          %404 = vmatprep.subr.bf16.mxu0 0
          %405 = vmatpush1.bf16.msra.mxu0 0
          %406 = vmatprep.mubr.bf16.mxu0 0
          %407 = vmatmul.mubr.bf16.gmra.mrb[0].mxu0 %v368
          %v408 = vpop.f32.mrb[0].mxu0
          %v409 = vadd.f32 0.0, %v408
          %v410 = vpop.f32.mrb[0].mxu0
          %v411 = vpop.f32.mrb[0].mxu0
          %v412 = vpop.f32.mrb[0].mxu0
          %413 = vdwg.mxu0
          %v414 = vadd.f32 %v364, %v409
          %415 = vst.msk [vmem:[#allocation4] sm:$0xff] %vm274, %v414
          %416 = vst.msk [vmem:[#allocation2] sm:$0xff] %vm356, %v338
        $region40: #{head_forward.3} parent=31 // pred_fallthru
          _
        // Predicated region
        $region41: #{head_forward.3} parent=31 // pred_check
          %p417 = pneg %p255
        $region42: #{head_forward.3} parent=31 // pred_check_branch
          %419 = sbr.rel (%p417) target = $region44
        $region43: #{head_forward.3} parent=31 // pred_region
          %v420 = vld [vmem:[#allocation4] sm:$0xff]
          %v421 = vld [vmem:[#allocation3] sm:$0xff]
          %423 = vset.pattern.permute.xlu0 0
          %424 = vperm.xlu0 %423, %v421
          %v425 = vpop.permute.xlu0 %424
          %v427 = vrcp.pop %v425
          %v428 = vmul.f32 %v420, %v427
          %vm429 = vcmask 261120
          %430 = vst.msk [vmem:[%s232] sm:$0xff] %vm429, %v428
        $region44: #{head_forward.3} parent=31 // pred_fallthru
          _
        %s431 = sand.u32 %s130, 1
        %s432 = scalar_lea.sflag [#allocation6], %s431
        %s433 = sand.u32 %s130, 1
        %s434 = smul.addr %s433, 8
        %s435 = scalar_lea.vmem [#allocation5], %s434
        // Predicated region
        $region45: #{head_forward.3} parent=31 // pred_check
          %p436 = pneg %p140
        $region46: #{head_forward.3} parent=31 // pred_check_branch
          %438 = sbr.rel (%p436) target = $region48
        $region47: #{head_forward.3} parent=31 // pred_region
          %s440 = ssub.s32 128, 128
          %441 = vsyncadd %s432, %s440
          %s442 = sadd.s32 %s23, %s22
          %s443 = smul.addr %s442, 128
          %s444 = scalar_lea.hbm %s3, %s443
          %s446 = sshll.u32 %s435, 4
          %s447 = int_to_ptr.vmem [resolvable:$true] %s446
          %449 = dma.vmem_to_hbm [thread:$0]  %s447, 128, %s444, %s432
        $region48: #{head_forward.3} parent=31 // pred_fallthru
          _
      $region32: #{head_forward.3} parent=5 // pred_fallthru
        _
      %p450 = scmp.le.s32.totalorder 2, %s12
      // Predicated region
      $region49: #{head_forward.3} parent=5 // pred_check
        %p451 = pneg %p450
      $region50: #{head_forward.3} parent=5 // pred_check_branch
        %453 = sbr.rel (%p451) target = $region52
      $region51: #{head_forward.3} parent=5 // pred_region
        %s454 = ssub.s32 %s12, 2
        // Predicated region
        $region53: #{head_forward.3} parent=51 // pred_check
          %p455 = pneg %p146
        $region54: #{head_forward.3} parent=51 // pred_check_branch
          %457 = sbr.rel (%p455) target = $region56
        $region55: #{head_forward.3} parent=51 // pred_region
          %s458 = sand.u32 %s131, 1
          %s459 = scalar_lea.sflag [#allocation6], %s458
          %s460 = sand.u32 %s131, 1
          %s461 = smul.addr %s460, 8
          %s462 = scalar_lea.vmem [#allocation5], %s461
          %463 = dma.done %s459, 128
        $region56: #{head_forward.3} parent=51 // pred_fallthru
          _
      $region52: #{head_forward.3} parent=5 // pred_fallthru
        _
    $region6: #{head_forward.3} parent=1 // loop_footer
      %s16 = sadd.s32 1, %s12
    $region7: #{head_forward.3} parent=1 // loop_footer_branch
      %11 = sbr.rel target = $region3
    $region8: #{head_forward.3} parent=1 // loop_exit
      _
    %464 = vsyncpa [#allocation6], 1
    %s465 = scalar_lea.sflag [#allocation6], 1
    %466 = vsyncpa %s465, 1

</llo_original>
